<compile_context>
chip_gen: v6e
topology: v6e:2x2x1
jax: 0.10.0
libtpu: 0.0.40
codegen_flags: <defaults>
</compile_context>

<pallas_src>
import jax
import jax.numpy as jnp
from jax.experimental import pallas as pl
from jax.experimental.pallas import tpu as pltpu

_LANE = 128      # TPU lane width
_TS_MAX = 2048   # sublane rows per tile: x tile (3, 2048, 128) f32 = 3 MiB,
                 # out tile 1 MiB -> ~8 MiB double-buffered, fits every gen.


def _linear_sin_kernel(w_ref, b_ref, x_ref, o_ref):
    """w_ref: SMEM (3,), b_ref: SMEM (1,), x_ref: VMEM (3, TS, 128),
    o_ref: VMEM (TS, 128).  All compute on dense (TS, 128) vreg slabs."""
    y = (x_ref[0] * w_ref[0]          # 3 full-occupancy VPU FMAs,
         + x_ref[1] * w_ref[1]        # scalars broadcast from SMEM
         + x_ref[2] * w_ref[2]
         + b_ref[0])
    o_ref[...] = jnp.sin(y).astype(o_ref.dtype)   # dense sin, unmasked store


def linear_sin(x, weight, bias, *, ts_max=_TS_MAX):
    """Computes sin(x @ weight.T + bias), i.e. torch.sin(nn.Linear(3,1)(x)).

    x:      (B, 3) float32
    weight: (1, 3) float32   (PyTorch layout: (out_features, in_features))
    bias:   (1,)   float32
    returns (B, 1) float32
    """
    B = x.shape[0]
    x = x.astype(jnp.float32)

    # Pad batch to a multiple of 128 only when needed (no-op for aligned B).
    b_pad = ((B + _LANE - 1) // _LANE) * _LANE
    if b_pad != B:
        x = jnp.pad(x, ((0, b_pad - B), (0, 0)))
    s = b_pad // _LANE

    # Feature-major + free row-major reshape -> sublane/lane-dense (3, S, 128).
    xt = jnp.transpose(x).reshape(3, s, _LANE)

    # Tile over S in multiples of 8 sublanes; aim for >= 2 grid steps so the
    # "parallel" grid axis can be split across v7x's two TensorCores.
    if s <= 8:
        ts = s                                   # single full block (always legal)
    else:
        target = -(-s // 2)                      # cdiv(S, 2): at least 2 blocks
        ts = min(ts_max, ((target + 7) // 8) * 8)
    n_blocks = pl.cdiv(s, ts)

    w = weight.reshape(3).astype(jnp.float32)    # SMEM scalars
    b = bias.reshape(1).astype(jnp.float32)

    out = pl.pallas_call(
        _linear_sin_kernel,
        out_shape=jax.ShapeDtypeStruct((s, _LANE), jnp.float32),
        grid=(n_blocks,),
        in_specs=[
            pl.BlockSpec(memory_space=pltpu.MemorySpace.SMEM),   # weight (3,)
            pl.BlockSpec(memory_space=pltpu.MemorySpace.SMEM),   # bias   (1,)
            pl.BlockSpec((3, ts, _LANE), lambda i: (0, i, 0)),   # x tile
        ],
        out_specs=pl.BlockSpec((ts, _LANE), lambda i: (i, 0)),   # out tile
        compiler_params=pltpu.CompilerParams(
            dimension_semantics=("parallel",),
        ),
        cost_estimate=pl.CostEstimate(
            flops=6 * B,            # 3 mul + 3 add per row
            transcendentals=B,      # one sin per row
            bytes_accessed=16 * B,  # 12 B in + 4 B out per row
        ),
    )(w, b, xt)

    # Free reshape back to (B_pad, 1); drop padded rows.
    return out.reshape(b_pad, 1)[:B]


if __name__ == "__main__":
    key = jax.random.PRNGKey(0)
    kx, kw, kb, kx2, kx3 = jax.random.split(key, 5)

    # Deterministic parameter init mimicking nn.Linear(3, 1):
    # uniform(-1/sqrt(in_features), 1/sqrt(in_features))
    bound = 1.0 / jnp.sqrt(3.0)
    weight = jax.random.uniform(kw, (1, 3), minval=-bound, maxval=bound,
                                dtype=jnp.float32)
    bias = jax.random.uniform(kb, (1,), minval=-bound, maxval=bound,
                              dtype=jnp.float32)

    def ref_fn(xv):
        return jnp.sin(xv @ weight.T + bias)

    # Small demo batch consistent with the module (B=8, in_features=3).
    x = jax.random.normal(kx, (8, 3), dtype=jnp.float32)
    out = linear_sin(x, weight, bias)
    jax.block_until_ready(out)
    assert out.shape == (8, 1)
    assert jnp.allclose(out, ref_fn(x), atol=1e-5, rtol=1e-5)

    # Multi-block grid: B=2000 -> S=16 -> 2 blocks of TS=8 ("parallel" split).
    x2 = jax.random.normal(kx2, (2000, 3), dtype=jnp.float32)
    out2 = linear_sin(x2, weight, bias)
    jax.block_until_ready(out2)
    assert out2.shape == (2000, 1)
    assert jnp.allclose(out2, ref_fn(x2), atol=1e-5, rtol=1e-5)

    # Ragged last grid block: B=1300 -> S=11, TS=8 -> partial second block.
    x3 = jax.random.normal(kx3, (1300, 3), dtype=jnp.float32)
    out3 = linear_sin(x3, weight, bias)
    jax.block_until_ready(out3)
    assert out3.shape == (1300, 1)
    assert jnp.allclose(out3, ref_fn(x3), atol=1e-5, rtol=1e-5)

    print("KERNEL_OK")
</pallas_src>

<mosaic_0001>
module attributes {stable_mosaic.version = 11 : i64} {
  func.func @_linear_sin_kernel(%arg0: i32, %arg1: memref<3xf32, #tpu.memory_space<smem>>, %arg2: memref<1xf32, #tpu.memory_space<smem>>, %arg3: memref<3x1x128xf32, #tpu.memory_space<vmem>>, %arg4: memref<1x128xf32, #tpu.memory_space<vmem>>) attributes {dimension_semantics = [#tpu.dimension_semantics<parallel>], iteration_bounds = array<i64: 1>, scalar_prefetch = 0 : i64, scratch_operands = 0 : i64, tpu.core_type = #tpu.core_type<tc>, window_params = [{transform_indices = @transform_0, window_bounds = array<i64: 3>}, {transform_indices = @transform_1, window_bounds = array<i64: 1>}, {transform_indices = @transform_2, window_bounds = array<i64: 3, 1, 128>}, {transform_indices = @transform_3, window_bounds = array<i64: 1, 128>}]} {
    %c0 = arith.constant 0 : index
    %c0_0 = arith.constant 0 : index
    %c0_1 = arith.constant 0 : index
    %0 = vector.load %arg3[%c0, %c0_0, %c0_1] : memref<3x1x128xf32, #tpu.memory_space<vmem>>, vector<1x1x128xf32>
    %1 = vector.shape_cast %0 : vector<1x1x128xf32> to vector<1x128xf32>
    %c0_2 = arith.constant 0 : index
    %2 = memref.load %arg1[%c0_2] : memref<3xf32, #tpu.memory_space<smem>>
    %3 = vector.broadcast %2 : f32 to vector<1x128xf32>
    %4 = arith.mulf %1, %3 : vector<1x128xf32>
    %c1 = arith.constant 1 : index
    %c0_3 = arith.constant 0 : index
    %c0_4 = arith.constant 0 : index
    %5 = vector.load %arg3[%c1, %c0_3, %c0_4] : memref<3x1x128xf32, #tpu.memory_space<vmem>>, vector<1x1x128xf32>
    %6 = vector.shape_cast %5 : vector<1x1x128xf32> to vector<1x128xf32>
    %c1_5 = arith.constant 1 : index
    %7 = memref.load %arg1[%c1_5] : memref<3xf32, #tpu.memory_space<smem>>
    %8 = vector.broadcast %7 : f32 to vector<1x128xf32>
    %9 = arith.mulf %6, %8 : vector<1x128xf32>
    %10 = arith.addf %4, %9 : vector<1x128xf32>
    %c2 = arith.constant 2 : index
    %c0_6 = arith.constant 0 : index
    %c0_7 = arith.constant 0 : index
    %11 = vector.load %arg3[%c2, %c0_6, %c0_7] : memref<3x1x128xf32, #tpu.memory_space<vmem>>, vector<1x1x128xf32>
    %12 = vector.shape_cast %11 : vector<1x1x128xf32> to vector<1x128xf32>
    %c2_8 = arith.constant 2 : index
    %13 = memref.load %arg1[%c2_8] : memref<3xf32, #tpu.memory_space<smem>>
    %14 = vector.broadcast %13 : f32 to vector<1x128xf32>
    %15 = arith.mulf %12, %14 : vector<1x128xf32>
    %16 = arith.addf %10, %15 : vector<1x128xf32>
    %c0_9 = arith.constant 0 : index
    %17 = memref.load %arg2[%c0_9] : memref<1xf32, #tpu.memory_space<smem>>
    %18 = vector.broadcast %17 : f32 to vector<1x128xf32>
    %19 = arith.addf %16, %18 : vector<1x128xf32>
    %20 = math.sin %19 : vector<1x128xf32>
    %c0_10 = arith.constant 0 : index
    %c0_11 = arith.constant 0 : index
    %21 = vector.load %arg4[%c0_10, %c0_11] : memref<1x128xf32, #tpu.memory_space<vmem>>, vector<1x128xf32>
    tpu.vector_store %arg4[%c0_10, %c0_11], %20 {strides = array<i32>} : memref<1x128xf32, #tpu.memory_space<vmem>>, vector<1x128xf32>,
    return
  }
  func.func @transform_0(%arg0: i32) -> i32 {
    %c0_i32 = arith.constant 0 : i32
    %c0_i32_0 = arith.constant 0 : i32
    return %c0_i32 : i32
  }
  func.func @transform_1(%arg0: i32) -> i32 {
    %c0_i32 = arith.constant 0 : i32
    %c0_i32_0 = arith.constant 0 : i32
    return %c0_i32 : i32
  }
  func.func @transform_2(%arg0: i32) -> (i32, i32, i32) {
    %c0_i32 = arith.constant 0 : i32
    %c0_i32_0 = arith.constant 0 : i32
    %c0_i32_1 = arith.constant 0 : i32
    return %c0_i32, %arg0, %c0_i32_0 : i32, i32, i32
  }
  func.func @transform_3(%arg0: i32) -> (i32, i32) {
    %c0_i32 = arith.constant 0 : i32
    %c0_i32_0 = arith.constant 0 : i32
    return %arg0, %c0_i32 : i32, i32
  }
}

</mosaic_0001>

<llo_original>
// kernel: tpu_custom_call.1
$region0: #{tpu_custom_call.1}
  #allocation0 [shape = 'u32[]', space=smem, size = 0x4, offset = 0x4, fixed_abs, tag = 'smem constant byte address 0x4 - core index']
  #allocation1 [shape = 'u32[144,128]{1,0:T(1,128)}', space=vmem, size = 0x12000, scoped, tag = 'internal scratch']
  #allocation2 [shape = 'f32[1]{0:T(128)S(6)}', space=smem, size = 0x200, scoped, tag = 'scoped memory for tpu_custom_call.1']
  %s0 = inlined_call_operand.hbm [shape: f32[3], index: 0, kind: input, shape index: {}]
  %s1 = inlined_call_operand.<no memory space> [shape: f32[1], index: 1, kind: input, shape index: {}]
  %s2 = inlined_call_operand.vmem [shape: f32[3,1,128], index: 2, kind: input, shape index: {}]
  %s3 = inlined_call_operand.hbm [shape: f32[1,128], index: 3, kind: output, shape index: {}]
  %s4 = sld [smem:[#allocation0]]
  $region26: #{tpu_custom_call.1} parent=0
    _
  %s6 = ssub.s32 1, %s4
  %s7 = scalar_select 0, %s6, %s4
  %8 = sst [smem:[#allocation2]] %s1
  $region1: #{tpu_custom_call.1} parent=0
    #allocation3 [shape = 'u8[512]{0}', space=smem, size = 0x200, scoped, tag = 'input window, operand 0, single buffered']
    #allocation4 [shape = 's32[1]{0}', space=sflag, size = 0x4, scoped, tag = 'scoped memory for tpu_custom_call.1']
    #allocation5 [shape = 's32[1]{0}', space=sflag, size = 0x4, scoped, tag = 'scoped memory for tpu_custom_call.1']
    #allocation6 [shape = 'u8[512]{0}', space=vmem, size = 0x400, scoped, tag = 'output window, operand 0, single buffered']
    %9 = vsyncpa [#allocation5], 0
    %10 = vsyncpa [#allocation4], 0
    // Predicated region
    $region2: #{tpu_custom_call.1} parent=1 // pred_check
      _
    $region3: #{tpu_custom_call.1} parent=1 // pred_check_branch
      %12 = sbr.rel (0) target = $region5
    $region4: #{tpu_custom_call.1} parent=1 // pred_region
      %s14 = ssub.s32 16, 16
      %15 = vsyncadd [#allocation5], %s14
      %18 = dma.hbm_to_smem %s0, 16, [#allocation3], [#allocation5]
    $region5: #{tpu_custom_call.1} parent=1 // pred_fallthru
      _
    // Predicated region
    $region6: #{tpu_custom_call.1} parent=1 // pred_check
      _
    $region7: #{tpu_custom_call.1} parent=1 // pred_check_branch
      %20 = sbr.rel (0) target = $region9
    $region8: #{tpu_custom_call.1} parent=1 // pred_region
      _
    $region9: #{tpu_custom_call.1} parent=1 // pred_fallthru
      _
    // Predicated region
    $region10: #{tpu_custom_call.1} parent=1 // pred_check
      _
    $region11: #{tpu_custom_call.1} parent=1 // pred_check_branch
      %22 = sbr.rel (0) target = $region13
    $region12: #{tpu_custom_call.1} parent=1 // pred_region
      _
    $region13: #{tpu_custom_call.1} parent=1 // pred_fallthru
      _
    // Predicated region
    $region14: #{tpu_custom_call.1} parent=1 // pred_check
      _
    $region15: #{tpu_custom_call.1} parent=1 // pred_check_branch
      %24 = sbr.rel (0) target = $region17
    $region16: #{tpu_custom_call.1} parent=1 // pred_region
      %25 = dma.done [#allocation5], 16
    $region17: #{tpu_custom_call.1} parent=1 // pred_fallthru
      _
    %26 = sfence
    %v27 = vld [vmem:[%s2] sm:$0x1]
    %s28 = sld [smem:[#allocation3]]
    %v29 = vstv %s28
    %v30 = vmul.f32 %v27, %v29
    %s31 = scalar_lea.vmem %s2, 1
    %v32 = vld [vmem:[%s31] sm:$0x1]
    %s33 = sld [smem:[#allocation3 + $0x1]]
    %v34 = vstv %s33
    %v35 = vmul.f32 %v32, %v34
    %v36 = vadd.f32 %v30, %v35
    %s37 = scalar_lea.vmem %s2, 2
    %v38 = vld [vmem:[%s37] sm:$0x1]
    %s39 = sld [smem:[#allocation3 + $0x2]]
    %v40 = vstv %s39
    %v41 = vmul.f32 %v38, %v40
    %v42 = vadd.f32 %v36, %v41
    %s43 = sld [smem:[#allocation2]]
    %v44 = vstv %s43
    %v45 = vadd.f32 %v42, %v44
    %v46 = vand.u32 2147483647, %v45
    %vm47 = vcmp.le.f32.partialorder %v46, 0.7853982
    %vm48 = vcmp.lt.s32.totalorder %v45, 0
    %v49 = vand.u32 %v45, 2139095040
    %v50 = vshrl.u32 %v49, 23
    %v51 = vsub.s32 %v50, 127
    %v52 = vand.u32 2147483647, %v45
    %v53 = vand.u32 %v52, 8388607
    %v54 = vor.u32 %v53, 8388608
    %v55 = vsub.s32 0, %v54
    %v56 = vadd.s32 %v51, 1
    %vm57 = vcmp.gt.s32.totalorder %v56, 0
    %v58 = vsel %vm57, %v56, 0
    %v59 = vshrl.u32 %v58, 5
    %v60 = vand.u32 %v58, 31
    %v61 = vsub.s32 32, %v60
    %v62 = vshrl.u32 683565275, %v61
    %v63 = vshll.u32 683565275, %v60
    %v64 = vshrl.u32 2475754826, %v61
    %v65 = vor.u32 %v63, %v64
    %v66 = vshll.u32 2475754826, %v60
    %v67 = vshrl.u32 2131351028, %v61
    %v68 = vor.u32 %v66, %v67
    %v69 = vshll.u32 2131351028, %v60
    %v70 = vshrl.u32 2102212464, %v61
    %v71 = vor.u32 %v69, %v70
    %v72 = vshll.u32 2102212464, %v60
    %v73 = vshrl.u32 920167782, %v61
    %v74 = vor.u32 %v72, %v73
    %v75 = vshll.u32 920167782, %v60
    %v76 = vshrl.u32 1326507024, %v61
    %v77 = vor.u32 %v75, %v76
    %vm78 = vcmp.lt.s32.totalorder %v59, 1
    %vm79 = vcmp.lt.s32.totalorder %v59, 2
    %vm80 = vcmp.lt.s32.totalorder %v59, 3
    %vm81 = vcmp.lt.s32.totalorder %v59, 4
    %v82 = vsel %vm78, %v62, %v65
    %v83 = vsel %vm81, %v71, 2102212464
    %v84 = vsel %vm80, %v68, %v83
    %v85 = vsel %vm79, %v82, %v84
    %v86 = vsel %vm78, %v65, %v68
    %v87 = vsel %vm81, %v74, 920167782
    %v88 = vsel %vm80, %v71, %v87
    %v89 = vsel %vm79, %v86, %v88
    %v90 = vsel %vm78, %v68, %v71
    %v91 = vsel %vm81, %v77, 1326507024
    %v92 = vsel %vm80, %v74, %v91
    %v93 = vsel %vm79, %v90, %v92
    %v94 = vshll.u32 %v54, 8
    %v95 = vmul.u32.u64.compose %v94, %v93
    %v96 = vextract.low.u32 %v95
    %v97 = vextract.high.u32 %v95
    %v98 = vmul.u32.u64.compose %v94, %v89
    %v99 = vextract.low.u32 %v98
    %v100 = vextract.high.u32 %v98
    %v101 = vmul.u32 %v94, %v85
    %v102 = vadd.s32 %v97, %v99
    %vm103 = vc.u32 %v97, %v99
    %v104 = vadd.s32 %v100, 1
    %v105 = vsel %vm103, %v104, %v100
    %v106 = vadd.s32 %v101, %v105
    %v107 = vadd.s32 %v106, 536870912
    %v108 = vshrl.u32 %v107, 30
    %v109 = vshll.u32 %v108, 30
    %v110 = vsub.s32 %v106, %v109
    %vm111 = vcmp.lt.s32.totalorder %v110, 0
    %v112 = vsub.s32 0, %v110
    %v113 = vsel %vm111, %v112, %v110
    %v114 = vclz %v113
    %v115 = vsub.s32 %v114, 2
    %vm116 = vcmp.gt.s32.totalorder 0, %v115
    %v117 = vsel %vm116, 0, %v115
    %v118 = vsub.s32 32, %v117
    %v119 = vshll.u32 %v110, %v117
    %v120 = vshrl.u32 %v102, %v118
    %v121 = vor.u32 %v119, %v120
    %v122 = vsub.s32 4294967266, %v117
    %v123 = vadd.s32 %v122, 127
    %v124 = vshll.u32 %v123, 23
    %v125 = vor.u32 4788187, %v124
    %v126 = vand.u32 2147483647, %v125
    %v128 = vcvt.s32.f32 %v121
    %v129 = vmul.f32 %v128, %v126
    %v130 = vxor.u32 %v129, 2147483648
    %v131 = vsel %vm48, %v130, %v129
    %v132 = vsub.s32 4, %v108
    %v133 = vsel %vm48, %v132, %v108
    %v134 = vsel %vm47, %v45, %v131
    %v135 = vsel %vm47, 0, %v133
    %v136 = vcosq.f32.pop %v134
    %v137 = vsinq.f32.pop %v134
    %vm138 = vweird.f32 %v45
    %v139 = vadd.s32 %v135, 3
    %v140 = vand.u32 %v139, 3
    %vm141 = vcmp.lt.s32.totalorder %v140, 2
    %vm142 = vcmp.eq.s32.totalorder %v140, 0
    %v143 = vxor.u32 %v137, 2147483648
    %v144 = vsel %vm142, %v136, %v143
    %vm145 = vcmp.eq.s32.totalorder %v140, 2
    %v146 = vxor.u32 %v136, 2147483648
    %v147 = vsel %vm145, %v146, %v137
    %v148 = vsel %vm141, %v144, %v147
    %v149 = vsel %vm138, nan, %v148
    %150 = vst [vmem:[#allocation6] sm:$0x1] %v149
    // Predicated region
    $region18: #{tpu_custom_call.1} parent=1 // pred_check
      _
    $region19: #{tpu_custom_call.1} parent=1 // pred_check_branch
      %152 = sbr.rel (0) target = $region21
    $region20: #{tpu_custom_call.1} parent=1 // pred_region
      %s154 = ssub.s32 16, 16
      %155 = vsyncadd [#allocation4], %s154
      %s157 = sshll.u32 [#allocation6], 4
      %s158 = int_to_ptr.vmem [resolvable:$true] %s157
      %160 = dma.vmem_to_hbm [thread:$0]  %s158, 16, %s3, [#allocation4]
    $region21: #{tpu_custom_call.1} parent=1 // pred_fallthru
      _
    // Predicated region
    $region22: #{tpu_custom_call.1} parent=1 // pred_check
      _
    $region23: #{tpu_custom_call.1} parent=1 // pred_check_branch
      %162 = sbr.rel (0) target = $region25
    $region24: #{tpu_custom_call.1} parent=1 // pred_region
      %163 = dma.done [#allocation4], 16
    $region25: #{tpu_custom_call.1} parent=1 // pred_fallthru
      _
    %164 = vsyncpa [#allocation4], 1
    %165 = vsyncpa [#allocation5], 1

</llo_original>
